<compile_context>
chip_gen: v7x
topology: tpu7x:2x2x1
jax: 0.10.0
libtpu: 0.0.40
codegen_flags: <defaults>
</compile_context>

<pallas_src>
import numpy as np
import jax
import jax.numpy as jnp
from jax.experimental import pallas as pl
from jax.experimental.pallas import tpu as pltpu


# ----------------------------------------------------------------------------
# Host-side geometry (deterministic): replaces cv2.Rodrigues + grid build
# ----------------------------------------------------------------------------
def _rodrigues(r):
    """Rotation vector -> rotation matrix (same formula as cv2.Rodrigues)."""
    r = np.asarray(r, np.float64)
    theta = np.linalg.norm(r)
    if theta < 1e-12:
        return np.eye(3, dtype=np.float32)
    k = r / theta
    K = np.array([[0.0, -k[2], k[1]],
                  [k[2], 0.0, -k[0]],
                  [-k[1], k[0], 0.0]], np.float64)
    R = (np.cos(theta) * np.eye(3)
         + (1.0 - np.cos(theta)) * np.outer(k, k)
         + np.sin(theta) * K)
    return R.astype(np.float32)


def _get_cube_grids(cube_dim, fov_rad):
    """List of 6 lon/lat grids, each (cube_dim, cube_dim, 2) in [-1, 1]."""
    r_lst = np.array([[0, -180.0, 0], [90.0, 0, 0], [0, 0, 0],
                      [0, 90, 0], [0, -90, 0], [-90, 0, 0]], np.float32) / 180.0 * np.pi
    R_lst = [_rodrigues(x) for x in r_lst]

    f = 0.5 * cube_dim / np.tan(0.5 * fov_rad)
    cx = (cube_dim - 1) / 2.0
    cy = cx
    x = np.tile(np.arange(cube_dim)[None, ..., None], [cube_dim, 1, 1])
    y = np.tile(np.arange(cube_dim)[..., None, None], [1, cube_dim, 1])
    ones = np.ones_like(x)
    xyz = np.concatenate([x, y, ones], axis=-1).astype(np.float64)
    K = np.array([[f, 0, cx], [0, f, cy], [0, 0, 1]], np.float32)
    xyz = xyz @ np.linalg.inv(K).T
    xyz /= np.linalg.norm(xyz, axis=-1, keepdims=True)

    grids = []
    for R in R_lst:
        tmp = xyz @ R
        lon = np.arctan2(tmp[..., 0:1], tmp[..., 2:]) / np.pi
        lat = np.arcsin(tmp[..., 1:2]) / (0.5 * np.pi)
        grids.append(np.concatenate([lon, lat], axis=-1).astype(np.float32))
    return grids


def _build_sampling_matrix_np(cube_dim, equ_h, fov_rad):
    """(H*W, 6*D*D) float32; bilinear grid_sample, align_corners=True, zero padding."""
    equ_w = equ_h * 2
    D = cube_dim
    grids = _get_cube_grids(cube_dim, fov_rad)

    P = 6 * D * D
    HW = equ_h * equ_w
    S = np.zeros((P, HW), np.float32)

    for face, g in enumerate(grids):
        gx = g[..., 0].reshape(-1).astype(np.float64)   # lon in [-1,1] -> width
        gy = g[..., 1].reshape(-1).astype(np.float64)   # lat in [-1,1] -> height
        ix = (gx + 1.0) * 0.5 * (equ_w - 1)
        iy = (gy + 1.0) * 0.5 * (equ_h - 1)
        x0 = np.floor(ix).astype(np.int64)
        y0 = np.floor(iy).astype(np.int64)
        x1 = x0 + 1
        y1 = y0 + 1
        fx = ix - x0
        fy = iy - y0
        rows = face * D * D + np.arange(D * D)
        corners = [(y0, x0, (1.0 - fy) * (1.0 - fx)),
                   (y0, x1, (1.0 - fy) * fx),
                   (y1, x0, fy * (1.0 - fx)),
                   (y1, x1, fy * fx)]
        for yi, xi, w in corners:
            m = ((xi >= 0) & (xi <= equ_w - 1) &
                 (yi >= 0) & (yi <= equ_h - 1)).astype(np.float64)
            yc = np.clip(yi, 0, equ_h - 1)
            xc = np.clip(xi, 0, equ_w - 1)
            np.add.at(S, (rows, yc * equ_w + xc), (w * m).astype(np.float32))
    return np.ascontiguousarray(S.T)   # (HW, P)


def _round_up(x, m):
    return ((x + m - 1) // m) * m


def _tile_sparsity(S_pad, tk, tn):
    """Per column-tile list of nonzero k-tile indices + counts (host side)."""
    K_pad, P_pad = S_pad.shape
    n_k, n_j = K_pad // tk, P_pad // tn
    nz = np.zeros((n_j, n_k), bool)
    for j in range(n_j):
        col = S_pad[:, j * tn:(j + 1) * tn]
        for k in range(n_k):
            nz[j, k] = bool(np.any(col[k * tk:(k + 1) * tk] != 0.0))
    nnz = nz.sum(axis=1).astype(np.int32)
    max_nz = max(1, int(nnz.max()))
    tbl = np.zeros((n_j, max_nz), np.int32)
    for j in range(n_j):
        idx = np.nonzero(nz[j])[0].astype(np.int32)
        if idx.size:
            tbl[j, :idx.size] = idx
            # Repeat the last valid index: skipped (padded) steps re-use the
            # already-resident W/x blocks, so no extra DMA is issued for them.
            tbl[j, idx.size:] = idx[-1]
    return tbl, nnz, max_nz


# ----------------------------------------------------------------------------
# Pallas kernel: tiled (M, K) @ (K, N), f32 VMEM accumulator, sparse K-tile walk
# ----------------------------------------------------------------------------
def _e2c_matmul_kernel(tbl_ref, nnz_ref, x_ref, w_ref, o_ref, acc_ref):
    # tbl_ref/nnz_ref: SMEM scalar-prefetch tables (tbl only used by index_maps)
    # x_ref: (tm, tk) bf16, w_ref: (tk, tn) bf16, o_ref/acc_ref: (tm, tn) f32
    del tbl_ref
    j = pl.program_id(1)
    k = pl.program_id(2)

    @pl.when(k == 0)
    def _():
        acc_ref[...] = jnp.zeros_like(acc_ref)

    @pl.when(k < nnz_ref[j])                      # skip padded / all-zero W tiles
    def _():
        acc_ref[...] += jnp.dot(x_ref[...], w_ref[...],
                                preferred_element_type=jnp.float32)

    @pl.when(k == pl.num_programs(2) - 1)
    def _():
        o_ref[...] = acc_ref[...]


# ----------------------------------------------------------------------------
# Builder: bakes the (pre-padded, bf16) sampling matrix + tile tables once
# ----------------------------------------------------------------------------
def make_equirec2cube(cube_dim, equ_h, fov_deg=90.0, tile_k=None, tile_n=None):
    equ_w = equ_h * 2
    HW = equ_h * equ_w
    P = 6 * cube_dim * cube_dim
    fov_rad = fov_deg / 180.0 * np.pi

    S = _build_sampling_matrix_np(cube_dim, equ_h, fov_rad)            # (HW, P) f32

    # --- tile sizes (K = HW reduction, N = P output pixels) -------------------
    if tile_k is None:
        tk = min(2048, _round_up(HW, 256))
    else:
        tk = tile_k
    if tile_n is None:
        tn = min(1024, _round_up(P, 256))
        # v7x megacore: keep >= 2 tiles on the "parallel" j axis when possible so
        # both TensorCores get W column panels.
        if _round_up(P, tn) // tn < 2 and tn >= 512:
            tn = _round_up(tn // 2, 256)
    else:
        tn = tile_n
    K_pad = _round_up(HW, tk)
    P_pad = _round_up(P, tn)
    n_j = P_pad // tn

    # --- W baked ONCE: padded + bf16 + tile-sparsity tables (perf-review fix) --
    S_pad = np.zeros((K_pad, P_pad), np.float32)
    S_pad[:HW, :P] = S
    tbl_np, nnz_np, max_nz = _tile_sparsity(S_pad, tk, tn)
    w_bf16 = jnp.asarray(S_pad, dtype=jnp.bfloat16)                    # (K_pad, P_pad)
    tbl_dev = jnp.asarray(tbl_np.reshape(-1), dtype=jnp.int32)         # flat -> SMEM
    nnz_dev = jnp.asarray(nnz_np, dtype=jnp.int32)

    def _forward(x, w_pad, tbl, nnz):
        B, C, H, W = x.shape
        assert H == equ_h and W == equ_w
        M = B * C
        # Single M tile at realistic batches -> W streamed exactly once per call;
        # multiple of 16 for bf16 sublane packing.
        tm = min(1024, _round_up(M, 16))
        M_pad = _round_up(M, tm)
        n_i = M_pad // tm

        x2d = x.reshape(M, HW).astype(jnp.bfloat16)
        x2d = jnp.pad(x2d, ((0, M_pad - M), (0, K_pad - HW)))

        x_map = lambda i, j, k, tbl, nnz: (i, tbl[j * max_nz + k])
        w_map = lambda i, j, k, tbl, nnz: (tbl[j * max_nz + k], j)
        o_map = lambda i, j, k, tbl, nnz: (i, j)

        w_spec = pl.BlockSpec((tk, tn), w_map)
        if max_nz >= 3:
            # v7x: a 3rd W buffer absorbs HBM arbitration jitter between the two TCs.
            try:
                w_spec = pl.BlockSpec((tk, tn), w_map, pipeline_mode=pl.Buffered(3))
            except TypeError:
                pass  # older BlockSpec without pipeline_mode

        visited = n_i * int(nnz_np.sum())          # MXU tile-matmuls actually executed
        cost = pl.CostEstimate(
            flops=2 * tm * tk * tn * visited,
            transcendentals=0,
            bytes_accessed=visited * (tm * tk + tk * tn) * 2 + M_pad * P_pad * 4,
        )

        out2d = pl.pallas_call(
            _e2c_matmul_kernel,
            out_shape=jax.ShapeDtypeStruct((M_pad, P_pad), jnp.float32),
            grid_spec=pltpu.PrefetchScalarGridSpec(
                num_scalar_prefetch=2,
                grid=(n_i, n_j, max_nz),
                in_specs=[pl.BlockSpec((tm, tk), x_map),   # activations
                          w_spec],                          # sampling matrix
                out_specs=pl.BlockSpec((tm, tn), o_map),
                scratch_shapes=[pltpu.VMEM((tm, tn), jnp.float32)],
            ),
            compiler_params=pltpu.CompilerParams(
                dimension_semantics=("parallel", "parallel", "arbitrary"),
                # Explicit budget well under v7x's 64 MiB per-TC VMEM (and trivially
                # under v5e/v6e's 128 MiB).
                vmem_limit_bytes=48 * 1024 * 1024,
            ),
            cost_estimate=cost,
        )(tbl, nnz, x2d, w_pad)

        # (M_pad, P_pad) -> (B, C, 6, D, D) -> (B, 6, C, D, D) -> (B*6, C, D, D)
        # (batch-major, face-minor; identical to the PyTorch cat/re-interleave).
        out = out2d[:M, :P].reshape(B, C, 6, cube_dim, cube_dim)
        return jnp.transpose(out, (0, 2, 1, 3, 4)).reshape(B * 6, C, cube_dim, cube_dim)

    fwd = jax.jit(_forward)

    def forward(x):
        return fwd(x, w_bf16, tbl_dev, nnz_dev)

    return forward


# ----------------------------------------------------------------------------
# Self-test
# ----------------------------------------------------------------------------
if __name__ == "__main__":
    key = jax.random.PRNGKey(0)
    B, C, equ_h = 2, 4, 16
    equ_w = equ_h * 2
    x = jax.random.normal(key, (B, C, equ_h, equ_w), dtype=jnp.float32)

    def reference(x, cube_dim, equ_h, fov_deg, full_f32=False):
        S = jnp.asarray(_build_sampling_matrix_np(cube_dim, equ_h,
                                                  fov_deg / 180.0 * np.pi))
        Bq, Cq = x.shape[0], x.shape[1]
        x2d = x.reshape(Bq * Cq, -1)
        if full_f32:
            y = jnp.dot(x2d, S, precision=jax.lax.Precision.HIGHEST,
                        preferred_element_type=jnp.float32)
        else:
            y = jnp.dot(x2d.astype(jnp.bfloat16), S.astype(jnp.bfloat16),
                        preferred_element_type=jnp.float32)
        y = y.reshape(Bq, Cq, 6, cube_dim, cube_dim)
        return jnp.transpose(y, (0, 2, 1, 3, 4)).reshape(Bq * 6, Cq, cube_dim, cube_dim)

    # 1) Default tiling, cube_dim=8 (single K tile, 2 column tiles at this toy size).
    cube_dim = 8
    fwd = make_equirec2cube(cube_dim, equ_h, 90.0)
    out = jax.block_until_ready(fwd(x))
    assert out.shape == (B * 6, C, cube_dim, cube_dim)
    # Tight: same bf16 formulation, f32 accumulation (apples-to-apples).
    assert jnp.allclose(out, reference(x, cube_dim, equ_h, 90.0), atol=2e-3, rtol=2e-3)
    # Loose: full-f32 dense reference (only bf16 input/weight rounding differs).
    assert jnp.allclose(out, reference(x, cube_dim, equ_h, 90.0, full_f32=True),
                        atol=5e-2, rtol=5e-2)

    # 2) Forced-small tiling, cube_dim=16: exercises the multi-step K reduction and
    #    the zero-tile skip (top/bottom faces touch only one band of equirect rows).
    cube_dim = 16
    fwd_small = make_equirec2cube(cube_dim, equ_h, 90.0, tile_k=256, tile_n=128)
    out_small = jax.block_until_ready(fwd_small(x))
    assert out_small.shape == (B * 6, C, cube_dim, cube_dim)
    assert jnp.allclose(out_small, reference(x, cube_dim, equ_h, 90.0),
                        atol=2e-3, rtol=2e-3)

    print("KERNEL_OK")
</pallas_src>

<mosaic_0001>
module attributes {stable_mosaic.version = 11 : i64} {
  func.func @_e2c_matmul_kernel(%arg0: i32, %arg1: i32, %arg2: i32, %arg3: memref<2xi32, #tpu.memory_space<smem>>, %arg4: memref<2xi32, #tpu.memory_space<smem>>, %arg5: memref<16x512xbf16, #tpu.memory_space<vmem>>, %arg6: memref<512x256xbf16, #tpu.memory_space<vmem>>, %arg7: memref<16x256xf32, #tpu.memory_space<vmem>>, %arg8: memref<16x256xf32, #tpu.memory_space<vmem>>) attributes {dimension_semantics = [#tpu.dimension_semantics<parallel>, #tpu.dimension_semantics<parallel>, #tpu.dimension_semantics<arbitrary>], iteration_bounds = array<i64: 1, 2, 1>, scalar_prefetch = 2 : i64, scratch_operands = 1 : i64, tpu.core_type = #tpu.core_type<tc>, window_params = [{transform_indices = @transform_0, window_bounds = array<i64: 16, 512>}, {transform_indices = @transform_1, window_bounds = array<i64: 512, 256>}, {transform_indices = @transform_2, window_bounds = array<i64: 16, 256>}]} {
    %c0_i32 = arith.constant 0 : i32
    %0 = arith.cmpi eq, %arg2, %c0_i32 : i32
    %1 = arith.extui %0 : i1 to i32
    %c0_i32_0 = arith.constant 0 : i32
    %2 = arith.cmpi ne, %1, %c0_i32_0 : i32
    scf.if %2 {
      %cst = arith.constant 0.000000e+00 : f32
      %11 = vector.broadcast %cst : f32 to vector<16x256xf32>
      %c0 = arith.constant 0 : index
      %c0_4 = arith.constant 0 : index
      %12 = vector.load %arg8[%c0, %c0_4] : memref<16x256xf32, #tpu.memory_space<vmem>>, vector<16x256xf32>
      tpu.vector_store %arg8[%c0, %c0_4], %11 {strides = array<i32>} : memref<16x256xf32, #tpu.memory_space<vmem>>, vector<16x256xf32>,
    } else {
    }
    %3 = arith.index_cast %arg1 : i32 to index
    %4 = memref.load %arg4[%3] : memref<2xi32, #tpu.memory_space<smem>>
    %5 = arith.cmpi slt, %arg2, %4 : i32
    %6 = arith.extui %5 : i1 to i32
    %c0_i32_1 = arith.constant 0 : i32
    %7 = arith.cmpi ne, %6, %c0_i32_1 : i32
    scf.if %7 {
      %c0 = arith.constant 0 : index
      %c0_4 = arith.constant 0 : index
      %11 = vector.load %arg8[%c0, %c0_4] : memref<16x256xf32, #tpu.memory_space<vmem>>, vector<16x256xf32>
      %c0_5 = arith.constant 0 : index
      %c0_6 = arith.constant 0 : index
      %12 = vector.load %arg5[%c0_5, %c0_6] : memref<16x512xbf16, #tpu.memory_space<vmem>>, vector<16x512xbf16>
      %c0_7 = arith.constant 0 : index
      %c0_8 = arith.constant 0 : index
      %13 = vector.load %arg6[%c0_7, %c0_8] : memref<512x256xbf16, #tpu.memory_space<vmem>>, vector<512x256xbf16>
      %cst = arith.constant dense<0.000000e+00> : vector<16x256xf32>
      %14 = tpu.matmul %12, %13, %cst {dimension_numbers = #tpu.dot_dimension_numbers<[1], [0], [0], [1], [0, 0, 1, 1], [], []>} : vector<16x512xbf16>, vector<512x256xbf16>, vector<16x256xf32> -> vector<16x256xf32>
      %15 = arith.addf %11, %14 : vector<16x256xf32>
      %c0_9 = arith.constant 0 : index
      %c0_10 = arith.constant 0 : index
      %16 = vector.load %arg8[%c0_9, %c0_10] : memref<16x256xf32, #tpu.memory_space<vmem>>, vector<16x256xf32>
      tpu.vector_store %arg8[%c0_9, %c0_10], %15 {strides = array<i32>} : memref<16x256xf32, #tpu.memory_space<vmem>>, vector<16x256xf32>,
    } else {
    }
    %c0_i32_2 = arith.constant 0 : i32
    %8 = arith.cmpi eq, %arg2, %c0_i32_2 : i32
    %9 = arith.extui %8 : i1 to i32
    %c0_i32_3 = arith.constant 0 : i32
    %10 = arith.cmpi ne, %9, %c0_i32_3 : i32
    scf.if %10 {
      %c0 = arith.constant 0 : index
      %c0_4 = arith.constant 0 : index
      %11 = vector.load %arg8[%c0, %c0_4] : memref<16x256xf32, #tpu.memory_space<vmem>>, vector<16x256xf32>
      %c0_5 = arith.constant 0 : index
      %c0_6 = arith.constant 0 : index
      %12 = vector.load %arg7[%c0_5, %c0_6] : memref<16x256xf32, #tpu.memory_space<vmem>>, vector<16x256xf32>
      tpu.vector_store %arg7[%c0_5, %c0_6], %11 {strides = array<i32>} : memref<16x256xf32, #tpu.memory_space<vmem>>, vector<16x256xf32>,
    } else {
    }
    return
  }
  func.func @transform_0(%arg0: i32, %arg1: i32, %arg2: i32, %arg3: memref<2xi32, #tpu.memory_space<smem>>, %arg4: memref<2xi32, #tpu.memory_space<smem>>) -> (i32, i32) {
    %c1_i32 = arith.constant 1 : i32
    %0 = arith.muli %arg1, %c1_i32 : i32
    %1 = arith.addi %0, %arg2 : i32
    %2 = arith.index_cast %1 : i32 to index
    %3 = memref.load %arg3[%2] : memref<2xi32, #tpu.memory_space<smem>>
    %c0_i32 = arith.constant 0 : i32
    return %arg0, %3 : i32, i32
  }
  func.func @transform_1(%arg0: i32, %arg1: i32, %arg2: i32, %arg3: memref<2xi32, #tpu.memory_space<smem>>, %arg4: memref<2xi32, #tpu.memory_space<smem>>) -> (i32, i32) {
    %c1_i32 = arith.constant 1 : i32
    %0 = arith.muli %arg1, %c1_i32 : i32
    %1 = arith.addi %0, %arg2 : i32
    %2 = arith.index_cast %1 : i32 to index
    %3 = memref.load %arg3[%2] : memref<2xi32, #tpu.memory_space<smem>>
    %c0_i32 = arith.constant 0 : i32
    return %3, %arg1 : i32, i32
  }
  func.func @transform_2(%arg0: i32, %arg1: i32, %arg2: i32, %arg3: memref<2xi32, #tpu.memory_space<smem>>, %arg4: memref<2xi32, #tpu.memory_space<smem>>) -> (i32, i32) {
    %c0_i32 = arith.constant 0 : i32
    return %arg0, %arg1 : i32, i32
  }
}

</mosaic_0001>

<llo_original>
// kernel: _forward.1
$region0: #{_forward.1}
  #allocation0 [shape = 'u32[]', space=smem, size = 0x4, offset = 0x4, fixed_abs, tag = 'smem constant byte address 0x4 - core index']
  #allocation1 [shape = 'u32[144,128]{1,0:T(1,128)}', space=vmem, size = 0x12000, scoped, tag = 'internal scratch']
  #allocation2 [shape = 'f32[16,256]{1,0:T(8,128)}', space=vmem, size = 0x4000, scoped, tag = 'scratch operand']
  #allocation3 [shape = 's32[1]{0}', space=sflag, size = 0x4, scoped, tag = 'scoped memory for _forward.1']
  #allocation4 [shape = 'u8[512]{0}', space=smem, size = 0x200, scoped, tag = 'prefetched SMEM operand 0']
  #allocation5 [shape = 'u8[512]{0}', space=smem, size = 0x200, scoped, tag = 'prefetched SMEM operand 1']
  %s0 = inlined_call_operand.vmem [shape: s32[2], index: 0, kind: input, shape index: {}]
  %s1 = inlined_call_operand.vmem [shape: s32[2], index: 1, kind: input, shape index: {}]
  %s2 = inlined_call_operand.vmem [shape: bf16[16,512], index: 2, kind: input, shape index: {}]
  %s3 = inlined_call_operand.hbm [shape: bf16[512,512], index: 3, kind: input, shape index: {}]
  %s4 = inlined_call_operand.vmem [shape: f32[16,512], index: 4, kind: output, shape index: {}]
  %s5 = sld [smem:[#allocation0]]
  $region76: #{_forward.1} parent=0
    _
  %s7 = ssub.s32 1, %s5
  %s8 = scalar_select 0, %s7, %s5
  %s9 = sshll.u32 %s0, 4
  %s10 = int_to_ptr.vmem [resolvable:$true] %s9
  %12 = dma.vmem_to_smem %s10, 16, [#allocation4], [#allocation3]
  %s13 = sshll.u32 %s1, 4
  %s14 = int_to_ptr.vmem [resolvable:$true] %s13
  %16 = dma.vmem_to_smem %s14, 16, [#allocation5], [#allocation3]
  %17 = dma.done [#allocation3], 32
  %18 = sfence
  $region1: #{_forward.1} parent=0
    #allocation6 [shape = 'u8[524288]{0}', space=vmem, size = 0x80000, scoped, tag = 'input window, operand 3']
    #allocation7 [shape = 's32[2]{0}', space=sflag, size = 0x8, scoped, tag = 'scoped memory for _forward.1']
    #allocation8 [shape = 'u8[32768]{0}', space=vmem, size = 0x8000, scoped, tag = 'output window, operand 0']
    %19 = vsyncpa [#allocation7], 0
    %s20 = scalar_lea.sflag [#allocation7], 1
    %21 = vsyncpa %s20, 0
    loop: start=0, step=1, limit=4
    $region2: #{_forward.1} parent=1 // loop_pre_header
      _
    $region3: #{_forward.1} parent=1 // loop_header
      %s23 = sphi 0, %s27
      %p24 = scmp.ge.s32.totalorder %s23, 4
      %s30 = sphi 0, %s49
      %s31 = sphi 0, %s45
      %s32 = sphi 0, %s41
      %s33 = sphi 0, %s30
      %s34 = sphi 0, %s31
      %s35 = sphi 0, %s32
      %s36 = sphi 0, %s33
      %s37 = sphi 0, %s34
      %s38 = sphi 0, %s35
      %s58 = sphi 0, %s60
      %s61 = sphi 0, %s58
      %s62 = sphi 0, %s61
      %s78 = sphi 0, %s62
      %s90 = sphi 0, %s92
      %s93 = sphi 0, %s90
      %s94 = sphi 0, %s93
      %s110 = sphi 0, %s94
      %s118 = sphi 0, %s120
      %s121 = sphi 0, %s118
      %s122 = sphi 0, %s121
      %s138 = sphi 0, %s122
    $region4: #{_forward.1} parent=1 // loop_header_branch
      %26 = sbr.rel (%p24) target = $region8
    $region5: #{_forward.1} parent=1 // loop_body
      %s28 = ssub.s32 %s23, 1
      %s29 = ssub.s32 %s23, 2
      %s39 = sadd.s32 1, %s32
      %p40 = scmp.ge.s32.totalorder %s39, 1
      %s41 = scalar_select %p40, 0, %s39
      %s42 = sadd.s32 1, %s31
      %s43 = scalar_select %p40, %s42, %s31
      %p44 = scmp.ge.s32.totalorder %s43, 2
      %s45 = scalar_select %p44, 0, %s43
      %s46 = sadd.s32 1, %s30
      %s47 = scalar_select %p44, %s46, %s30
      %p48 = scmp.ge.s32.totalorder %s47, 1
      %s49 = scalar_select %p48, 0, %s47
      %s50 = sadd.s32 %s31, %s32
      %s51 = sld [smem:[#allocation4 + %s50]]
      %s52 = sadd.s32 %s45, %s41
      %s53 = sld [smem:[#allocation4 + %s52]]
      %s54 = ssub.s32 %s30, %s49
      %s55 = ssub.s32 %s51, %s53
      %s56 = sor.u32 %s54, %s55
      %p57 = scmp.eq.s32.totalorder %s56, 0
      %s59 = sadd.s32 %s58, 1
      %s60 = scalar_select %p57, %s58, %s59
      %p63 = pneg %p57
      %p64 = scmp.eq.s32.totalorder %s23, 1
      %p65 = por %p63, %p64
      %p66 = scmp.ne.s32.totalorder %s58, %s61
      %p67 = scmp.eq.s32.totalorder %s23, 0
      %p68 = por %p66, %p67
      %p69 = scmp.ne.s32.totalorder %s58, %s61
      %p70 = scmp.eq.s32.totalorder %s28, 1
      %p71 = por %p69, %p70
      %p72 = scmp.ne.s32.totalorder %s61, %s62
      %p73 = scmp.eq.s32.totalorder %s28, 0
      %p74 = por %p72, %p73
      %p75 = scmp.ne.s32.totalorder %s61, %s62
      %p76 = scmp.eq.s32.totalorder %s29, 1
      %p77 = por %p75, %p76
      %p79 = scmp.ne.s32.totalorder %s62, %s78
      %p80 = scmp.eq.s32.totalorder %s29, 0
      %p81 = por %p79, %p80
      %s82 = sadd.s32 %s31, %s32
      %s83 = sld [smem:[#allocation4 + %s82]]
      %s84 = sadd.s32 %s45, %s41
      %s85 = sld [smem:[#allocation4 + %s84]]
      %s86 = ssub.s32 %s83, %s85
      %s87 = ssub.s32 %s31, %s45
      %s88 = sor.u32 %s86, %s87
      %p89 = scmp.eq.s32.totalorder %s88, 0
      %s91 = sadd.s32 %s90, 1
      %s92 = scalar_select %p89, %s90, %s91
      %p95 = pneg %p89
      %p96 = scmp.eq.s32.totalorder %s23, 1
      %p97 = por %p95, %p96
      %p98 = scmp.ne.s32.totalorder %s90, %s93
      %p99 = scmp.eq.s32.totalorder %s23, 0
      %p100 = por %p98, %p99
      %p101 = scmp.ne.s32.totalorder %s90, %s93
      %p102 = scmp.eq.s32.totalorder %s28, 1
      %p103 = por %p101, %p102
      %p104 = scmp.ne.s32.totalorder %s93, %s94
      %p105 = scmp.eq.s32.totalorder %s28, 0
      %p106 = por %p104, %p105
      %p107 = scmp.ne.s32.totalorder %s93, %s94
      %p108 = scmp.eq.s32.totalorder %s29, 1
      %p109 = por %p107, %p108
      %p111 = scmp.ne.s32.totalorder %s94, %s110
      %p112 = scmp.eq.s32.totalorder %s29, 0
      %p113 = por %p111, %p112
      %s114 = ssub.s32 %s30, %s49
      %s115 = ssub.s32 %s31, %s45
      %s116 = sor.u32 %s114, %s115
      %p117 = scmp.eq.s32.totalorder %s116, 0
      %s119 = sadd.s32 %s118, 1
      %s120 = scalar_select %p117, %s118, %s119
      %p123 = pneg %p117
      %p124 = scmp.eq.s32.totalorder %s23, 1
      %p125 = por %p123, %p124
      %p126 = scmp.ne.s32.totalorder %s118, %s121
      %p127 = scmp.eq.s32.totalorder %s23, 0
      %p128 = por %p126, %p127
      %p129 = scmp.ne.s32.totalorder %s118, %s121
      %p130 = scmp.eq.s32.totalorder %s28, 1
      %p131 = por %p129, %p130
      %p132 = scmp.ne.s32.totalorder %s121, %s122
      %p133 = scmp.eq.s32.totalorder %s28, 0
      %p134 = por %p132, %p133
      %p135 = scmp.ne.s32.totalorder %s121, %s122
      %p136 = scmp.eq.s32.totalorder %s29, 1
      %p137 = por %p135, %p136
      %p139 = scmp.ne.s32.totalorder %s122, %s138
      %p140 = scmp.eq.s32.totalorder %s29, 0
      %p141 = por %p139, %p140
      %p142 = scmp.le.s32.totalorder 1, %s23
      %p143 = scmp.lt.s32.totalorder %s23, 3
      %p144 = pnand %p142, %p143
      %p145 = pneg %p144
      // Predicated region
      $region9: #{_forward.1} parent=5 // pred_check
        _
      $region10: #{_forward.1} parent=5 // pred_check_branch
        %147 = sbr.rel (%p144) target = $region12
      $region11: #{_forward.1} parent=5 // pred_region
        %s148 = ssub.s32 %s23, 1
      $region12: #{_forward.1} parent=5 // pred_fallthru
        _
      %p149 = scmp.lt.s32.totalorder %s23, 2
      // Predicated region
      $region13: #{_forward.1} parent=5 // pred_check
        %p150 = pneg %p149
      $region14: #{_forward.1} parent=5 // pred_check_branch
        %152 = sbr.rel (%p150) target = $region16
      $region15: #{_forward.1} parent=5 // pred_region
        // Predicated region
        $region17: #{_forward.1} parent=15 // pred_check
          %p153 = pneg %p68
        $region18: #{_forward.1} parent=15 // pred_check_branch
          %155 = sbr.rel (%p153) target = $region20
        $region19: #{_forward.1} parent=15 // pred_region
          %s156 = sadd.s32 %s31, %s32
          %s157 = sld [smem:[#allocation4 + %s156]]
          %s158 = smul.u32 2, %s30
          %s159 = smul.u32 4, %s157
          %p160 = scmp.lt.s32.totalorder %s158, 1
          %s161 = scalar_select %p160, %s158, 1
          %p162 = scmp.lt.s32.totalorder %s159, 3
          %s163 = scalar_select %p162, %s159, 3
          %s164 = smul.addr %s161, 4
          %s165 = sadd.s32 %s163, %s164
          %s166 = smul.addr %s165, 4
          %s167 = scalar_lea.vmem %s2, %s166
          %s168 = sadd.s32 %s31, %s32
          %s169 = sld [smem:[#allocation4 + %s168]]
          %s170 = smul.u32 2, %s30
          %s171 = smul.u32 4, %s169
        $region20: #{_forward.1} parent=15 // pred_fallthru
          _
        // Predicated region
        $region21: #{_forward.1} parent=15 // pred_check
          %p172 = pneg %p100
        $region22: #{_forward.1} parent=15 // pred_check_branch
          %174 = sbr.rel (%p172) target = $region24
        $region23: #{_forward.1} parent=15 // pred_region
          %s175 = sand.u32 %s90, 1
          %s176 = scalar_lea.sflag [#allocation7], %s175
          %s177 = sand.u32 %s90, 1
          %s178 = smul.addr %s177, 512
          %s179 = scalar_lea.vmem [#allocation6], %s178
          %s180 = sadd.s32 %s31, %s32
          %s181 = sld [smem:[#allocation4 + %s180]]
          %s182 = smul.u32 64, %s181
          %s183 = smul.u32 2, %s31
          %s185 = ssub.s32 8192, 8192
          %186 = vsyncadd %s176, %s185
          %s187 = smul.addr %s182, 4
          %s188 = sadd.s32 %s183, %s187
          %s189 = smul.addr %s188, 64
          %s190 = scalar_lea.hbm %s3, %s189
          %s191 = sshll.u32 %s179, 4
          %s192 = int_to_ptr.vmem [resolvable:$true] %s191
          %197 = dma.hbm_to_vmem [thread:$0]  %s190, 8192, %s192, %s176, 256, 128, 8
        $region24: #{_forward.1} parent=15 // pred_fallthru
          _
      $region16: #{_forward.1} parent=5 // pred_fallthru
        _
      %p198 = scmp.le.s32.totalorder 1, %s23
      %p199 = scmp.lt.s32.totalorder %s23, 3
      %p200 = pnand %p198, %p199
      %p201 = pneg %p200
      // Predicated region
      $region25: #{_forward.1} parent=5 // pred_check
        _
      $region26: #{_forward.1} parent=5 // pred_check_branch
        %203 = sbr.rel (%p200) target = $region28
      $region27: #{_forward.1} parent=5 // pred_region
        %s204 = ssub.s32 %s23, 1
        %s205 = sand.u32 %s93, 1
        %s206 = scalar_lea.sflag [#allocation7], %s205
        %s207 = sand.u32 %s93, 1
        %s208 = smul.addr %s207, 512
        %s209 = scalar_lea.vmem [#allocation6], %s208
        // Predicated region
        $region29: #{_forward.1} parent=27 // pred_check
          %p210 = pneg %p106
        $region30: #{_forward.1} parent=27 // pred_check_branch
          %212 = sbr.rel (%p210) target = $region32
        $region31: #{_forward.1} parent=27 // pred_region
          %213 = dma.done %s206, 8192
        $region32: #{_forward.1} parent=27 // pred_fallthru
          _
        %s214 = sadd.s32 %s34, %s35
        %s215 = sld [smem:[#allocation4 + %s214]]
        %s216 = smul.u32 2, %s33
        %s217 = smul.u32 4, %s215
        %p218 = scmp.lt.s32.totalorder %s216, 1
        %s219 = scalar_select %p218, %s216, 1
        %p220 = scmp.lt.s32.totalorder %s217, 3
        %s221 = scalar_select %p220, %s217, 3
        %s222 = smul.addr %s219, 4
        %s223 = sadd.s32 %s221, %s222
        %s224 = smul.addr %s223, 4
        %s225 = scalar_lea.vmem %s2, %s224
        %p226 = pneg %p74
        %p227 = pneg %p71
        %s228 = sand.u32 %s93, 1
        %s229 = scalar_lea.sflag [#allocation7], %s228
        %s230 = sand.u32 %s93, 1
        %s231 = smul.addr %s230, 512
        %s232 = scalar_lea.vmem [#allocation6], %s231
        %p233 = pneg %p106
        %p234 = pneg %p103
        %p235 = pneg %p134
        %p236 = pneg %p131
        %s237 = sand.u32 %s121, 1
        %s238 = sand.u32 %s121, 1
        %s239 = smul.addr %s238, 32
        %s240 = scalar_lea.vmem [#allocation8], %s239
        %s241 = sadd.s32 %s34, %s35
        %s242 = sld [smem:[#allocation4 + %s241]]
        %s243 = smul.u32 2, %s33
        %s244 = smul.u32 4, %s242
        %p245 = scmp.lt.s32.totalorder %s243, 1
        %s246 = scalar_select %p245, %s243, 1
        %p247 = scmp.lt.s32.totalorder %s244, 3
        %s248 = scalar_select %p247, %s244, 3
        %s249 = smul.addr %s246, 4
        %s250 = sadd.s32 %s248, %s249
        %s251 = smul.addr %s250, 4
        %s252 = scalar_lea.vmem %s2, %s251
        %s253 = sadd.s32 %s34, %s35
        %s254 = sld [smem:[#allocation4 + %s253]]
        %s255 = smul.u32 2, %s33
        %s256 = smul.u32 4, %s254
        %s257 = sadd.s32 %s34, %s35
        %s258 = sld [smem:[#allocation4 + %s257]]
        %s259 = smul.u32 64, %s258
        %s260 = smul.u32 2, %s34
        %s261 = smul.u32 2, %s33
        %s262 = smul.u32 2, %s34
        %p263 = scmp.eq.s32.totalorder %s35, 0
        // Predicated region
        $region33: #{_forward.1} parent=27 // pred_check
          %p264 = pneg %p263
        $region34: #{_forward.1} parent=27 // pred_check_branch
          %266 = sbr.rel (%p264) target = $region36
        $region35: #{_forward.1} parent=27 // pred_region
          %267 = vst [vmem:[#allocation2] sm:$0xff] 0.0
          %268 = vst [vmem:[#allocation2 + $0x8] sm:$0xff] 0.0
          %269 = vst [vmem:[#allocation2 + $0x10] sm:$0xff] 0.0
          %270 = vst [vmem:[#allocation2 + $0x18] sm:$0xff] 0.0
        $region36: #{_forward.1} parent=27 // pred_fallthru
          _
        %s271 = sld [smem:[#allocation5 + %s34]]
        %p272 = scmp.lt.s32.totalorder %s35, %s271
        // Predicated region
        $region37: #{_forward.1} parent=27 // pred_check
          %p273 = pneg %p272
        $region38: #{_forward.1} parent=27 // pred_check_branch
          %275 = sbr.rel (%p273) target = $region40
        $region39: #{_forward.1} parent=27 // pred_region
          %v276 = vld [vmem:[#allocation2] sm:$0xff]
          %v277 = vld [vmem:[#allocation2 + $0x8] sm:$0xff]
          %v278 = vld [vmem:[#allocation2 + $0x10] sm:$0xff]
          %v279 = vld [vmem:[#allocation2 + $0x18] sm:$0xff]
          %v280 = vld [vmem:[%s252] sm:$0xff]
          %v281 = vld [vmem:[%s252 + $0x8] sm:$0xff]
          %v282 = vld [vmem:[%s252 + $0x10] sm:$0xff]
          %v283 = vld [vmem:[%s252 + $0x18] sm:$0xff]
          %v284 = vld [vmem:[%s209] sm:$0xff]
          %v285 = vld [vmem:[%s209 + $0x8] sm:$0xff]
          %v286 = vld [vmem:[%s209 + $0x10] sm:$0xff]
          %v287 = vld [vmem:[%s209 + $0x18] sm:$0xff]
          %v288 = vld [vmem:[%s209 + $0x20] sm:$0xff]
          %v289 = vld [vmem:[%s209 + $0x28] sm:$0xff]
          %v290 = vld [vmem:[%s209 + $0x30] sm:$0xff]
          %v291 = vld [vmem:[%s209 + $0x38] sm:$0xff]
          %v292 = vld [vmem:[%s209 + $0x40] sm:$0xff]
          %v293 = vld [vmem:[%s209 + $0x48] sm:$0xff]
          %v294 = vld [vmem:[%s209 + $0x50] sm:$0xff]
          %v295 = vld [vmem:[%s209 + $0x58] sm:$0xff]
          %v296 = vld [vmem:[%s209 + $0x60] sm:$0xff]
          %v297 = vld [vmem:[%s209 + $0x68] sm:$0xff]
          %v298 = vld [vmem:[%s209 + $0x70] sm:$0xff]
          %v299 = vld [vmem:[%s209 + $0x78] sm:$0xff]
          %v300 = vld [vmem:[%s209 + $0x80] sm:$0xff]
          %v301 = vld [vmem:[%s209 + $0x88] sm:$0xff]
          %v302 = vld [vmem:[%s209 + $0x90] sm:$0xff]
          %v303 = vld [vmem:[%s209 + $0x98] sm:$0xff]
          %v304 = vld [vmem:[%s209 + $0xa0] sm:$0xff]
          %v305 = vld [vmem:[%s209 + $0xa8] sm:$0xff]
          %v306 = vld [vmem:[%s209 + $0xb0] sm:$0xff]
          %v307 = vld [vmem:[%s209 + $0xb8] sm:$0xff]
          %v308 = vld [vmem:[%s209 + $0xc0] sm:$0xff]
          %v309 = vld [vmem:[%s209 + $0xc8] sm:$0xff]
          %v310 = vld [vmem:[%s209 + $0xd0] sm:$0xff]
          %v311 = vld [vmem:[%s209 + $0xd8] sm:$0xff]
          %v312 = vld [vmem:[%s209 + $0xe0] sm:$0xff]
          %v313 = vld [vmem:[%s209 + $0xe8] sm:$0xff]
          %v314 = vld [vmem:[%s209 + $0xf0] sm:$0xff]
          %v315 = vld [vmem:[%s209 + $0xf8] sm:$0xff]
          %v316 = vld [vmem:[%s209 + $0x100] sm:$0xff]
          %v317 = vld [vmem:[%s209 + $0x108] sm:$0xff]
          %v318 = vld [vmem:[%s209 + $0x110] sm:$0xff]
          %v319 = vld [vmem:[%s209 + $0x118] sm:$0xff]
          %v320 = vld [vmem:[%s209 + $0x120] sm:$0xff]
          %v321 = vld [vmem:[%s209 + $0x128] sm:$0xff]
          %v322 = vld [vmem:[%s209 + $0x130] sm:$0xff]
          %v323 = vld [vmem:[%s209 + $0x138] sm:$0xff]
          %v324 = vld [vmem:[%s209 + $0x140] sm:$0xff]
          %v325 = vld [vmem:[%s209 + $0x148] sm:$0xff]
          %v326 = vld [vmem:[%s209 + $0x150] sm:$0xff]
          %v327 = vld [vmem:[%s209 + $0x158] sm:$0xff]
          %v328 = vld [vmem:[%s209 + $0x160] sm:$0xff]
          %v329 = vld [vmem:[%s209 + $0x168] sm:$0xff]
          %v330 = vld [vmem:[%s209 + $0x170] sm:$0xff]
          %v331 = vld [vmem:[%s209 + $0x178] sm:$0xff]
          %v332 = vld [vmem:[%s209 + $0x180] sm:$0xff]
          %v333 = vld [vmem:[%s209 + $0x188] sm:$0xff]
          %v334 = vld [vmem:[%s209 + $0x190] sm:$0xff]
          %v335 = vld [vmem:[%s209 + $0x198] sm:$0xff]
          %v336 = vld [vmem:[%s209 + $0x1a0] sm:$0xff]
          %v337 = vld [vmem:[%s209 + $0x1a8] sm:$0xff]
          %v338 = vld [vmem:[%s209 + $0x1b0] sm:$0xff]
          %v339 = vld [vmem:[%s209 + $0x1b8] sm:$0xff]
          %v340 = vld [vmem:[%s209 + $0x1c0] sm:$0xff]
          %v341 = vld [vmem:[%s209 + $0x1c8] sm:$0xff]
          %v342 = vld [vmem:[%s209 + $0x1d0] sm:$0xff]
          %v343 = vld [vmem:[%s209 + $0x1d8] sm:$0xff]
          %v344 = vld [vmem:[%s209 + $0x1e0] sm:$0xff]
          %v345 = vld [vmem:[%s209 + $0x1e8] sm:$0xff]
          %v346 = vld [vmem:[%s209 + $0x1f0] sm:$0xff]
          %v347 = vld [vmem:[%s209 + $0x1f8] sm:$0xff]
          %v352 = vunpack.c.l.b16 %v280
          %v353 = vunpack.c.h.b16 %v280
          %v354 = vunpack.c.l.b16 %v281
          %v355 = vunpack.c.h.b16 %v281
          %v356 = vunpack.c.l.b16 %v282
          %v357 = vunpack.c.h.b16 %v282
          %v358 = vunpack.c.l.b16 %v283
          %v359 = vunpack.c.h.b16 %v283
          %v360 = vpack.c.b16 %v356, %v352
          %v361 = vpack.c.b16 %v357, %v353
          %v362 = vpack.c.b16 %v358, %v354
          %v363 = vpack.c.b16 %v359, %v355
          %v432 = vunpack.c.l.b16 %v284
          %v433 = vunpack.c.h.b16 %v284
          %v434 = vunpack.c.l.b16 %v285
          %v435 = vunpack.c.h.b16 %v285
          %v436 = vunpack.c.l.b16 %v286
          %v437 = vunpack.c.h.b16 %v286
          %v438 = vunpack.c.l.b16 %v287
          %v439 = vunpack.c.h.b16 %v287
          %v440 = vunpack.c.l.b16 %v288
          %v441 = vunpack.c.h.b16 %v288
          %v442 = vunpack.c.l.b16 %v289
          %v443 = vunpack.c.h.b16 %v289
          %v444 = vunpack.c.l.b16 %v290
          %v445 = vunpack.c.h.b16 %v290
          %v446 = vunpack.c.l.b16 %v291
          %v447 = vunpack.c.h.b16 %v291
          %v448 = vunpack.c.l.b16 %v292
          %v449 = vunpack.c.h.b16 %v292
          %v450 = vunpack.c.l.b16 %v293
          %v451 = vunpack.c.h.b16 %v293
          %v452 = vunpack.c.l.b16 %v294
          %v453 = vunpack.c.h.b16 %v294
          %v454 = vunpack.c.l.b16 %v295
          %v455 = vunpack.c.h.b16 %v295
          %v456 = vunpack.c.l.b16 %v296
          %v457 = vunpack.c.h.b16 %v296
          %v458 = vunpack.c.l.b16 %v297
          %v459 = vunpack.c.h.b16 %v297
          %v460 = vunpack.c.l.b16 %v298
          %v461 = vunpack.c.h.b16 %v298
          %v462 = vunpack.c.l.b16 %v299
          %v463 = vunpack.c.h.b16 %v299
          %v464 = vunpack.c.l.b16 %v300
          %v465 = vunpack.c.h.b16 %v300
          %v466 = vunpack.c.l.b16 %v301
          %v467 = vunpack.c.h.b16 %v301
          %v468 = vunpack.c.l.b16 %v302
          %v469 = vunpack.c.h.b16 %v302
          %v470 = vunpack.c.l.b16 %v303
          %v471 = vunpack.c.h.b16 %v303
          %v472 = vunpack.c.l.b16 %v304
          %v473 = vunpack.c.h.b16 %v304
          %v474 = vunpack.c.l.b16 %v305
          %v475 = vunpack.c.h.b16 %v305
          %v476 = vunpack.c.l.b16 %v306
          %v477 = vunpack.c.h.b16 %v306
          %v478 = vunpack.c.l.b16 %v307
          %v479 = vunpack.c.h.b16 %v307
          %v480 = vunpack.c.l.b16 %v308
          %v481 = vunpack.c.h.b16 %v308
          %v482 = vunpack.c.l.b16 %v309
          %v483 = vunpack.c.h.b16 %v309
          %v484 = vunpack.c.l.b16 %v310
          %v485 = vunpack.c.h.b16 %v310
          %v486 = vunpack.c.l.b16 %v311
          %v487 = vunpack.c.h.b16 %v311
          %v488 = vunpack.c.l.b16 %v312
          %v489 = vunpack.c.h.b16 %v312
          %v490 = vunpack.c.l.b16 %v313
          %v491 = vunpack.c.h.b16 %v313
          %v492 = vunpack.c.l.b16 %v314
          %v493 = vunpack.c.h.b16 %v314
          %v494 = vunpack.c.l.b16 %v315
          %v495 = vunpack.c.h.b16 %v315
          %v496 = vunpack.c.l.b16 %v316
          %v497 = vunpack.c.h.b16 %v316
          %v498 = vunpack.c.l.b16 %v317
          %v499 = vunpack.c.h.b16 %v317
          %v500 = vunpack.c.l.b16 %v318
          %v501 = vunpack.c.h.b16 %v318
          %v502 = vunpack.c.l.b16 %v319
          %v503 = vunpack.c.h.b16 %v319
          %v504 = vunpack.c.l.b16 %v320
          %v505 = vunpack.c.h.b16 %v320
          %v506 = vunpack.c.l.b16 %v321
          %v507 = vunpack.c.h.b16 %v321
          %v508 = vunpack.c.l.b16 %v322
          %v509 = vunpack.c.h.b16 %v322
          %v510 = vunpack.c.l.b16 %v323
          %v511 = vunpack.c.h.b16 %v323
          %v512 = vunpack.c.l.b16 %v324
          %v513 = vunpack.c.h.b16 %v324
          %v514 = vunpack.c.l.b16 %v325
          %v515 = vunpack.c.h.b16 %v325
          %v516 = vunpack.c.l.b16 %v326
          %v517 = vunpack.c.h.b16 %v326
          %v518 = vunpack.c.l.b16 %v327
          %v519 = vunpack.c.h.b16 %v327
          %v520 = vunpack.c.l.b16 %v328
          %v521 = vunpack.c.h.b16 %v328
          %v522 = vunpack.c.l.b16 %v329
          %v523 = vunpack.c.h.b16 %v329
          %v524 = vunpack.c.l.b16 %v330
          %v525 = vunpack.c.h.b16 %v330
          %v526 = vunpack.c.l.b16 %v331
          %v527 = vunpack.c.h.b16 %v331
          %v528 = vunpack.c.l.b16 %v332
          %v529 = vunpack.c.h.b16 %v332
          %v530 = vunpack.c.l.b16 %v333
          %v531 = vunpack.c.h.b16 %v333
          %v532 = vunpack.c.l.b16 %v334
          %v533 = vunpack.c.h.b16 %v334
          %v534 = vunpack.c.l.b16 %v335
          %v535 = vunpack.c.h.b16 %v335
          %v536 = vunpack.c.l.b16 %v336
          %v537 = vunpack.c.h.b16 %v336
          %v538 = vunpack.c.l.b16 %v337
          %v539 = vunpack.c.h.b16 %v337
          %v540 = vunpack.c.l.b16 %v338
          %v541 = vunpack.c.h.b16 %v338
          %v542 = vunpack.c.l.b16 %v339
          %v543 = vunpack.c.h.b16 %v339
          %v544 = vunpack.c.l.b16 %v340
          %v545 = vunpack.c.h.b16 %v340
          %v546 = vunpack.c.l.b16 %v341
          %v547 = vunpack.c.h.b16 %v341
          %v548 = vunpack.c.l.b16 %v342
          %v549 = vunpack.c.h.b16 %v342
          %v550 = vunpack.c.l.b16 %v343
          %v551 = vunpack.c.h.b16 %v343
          %v552 = vunpack.c.l.b16 %v344
          %v553 = vunpack.c.h.b16 %v344
          %v554 = vunpack.c.l.b16 %v345
          %v555 = vunpack.c.h.b16 %v345
          %v556 = vunpack.c.l.b16 %v346
          %v557 = vunpack.c.h.b16 %v346
          %v558 = vunpack.c.l.b16 %v347
          %v559 = vunpack.c.h.b16 %v347
          %v560 = vpack.c.b16 %v434, %v432
          %v561 = vpack.c.b16 %v435, %v433
          %v562 = vpack.c.b16 %v438, %v436
          %v563 = vpack.c.b16 %v439, %v437
          %v564 = vpack.c.b16 %v442, %v440
          %v565 = vpack.c.b16 %v443, %v441
          %v566 = vpack.c.b16 %v446, %v444
          %v567 = vpack.c.b16 %v447, %v445
          %v568 = vpack.c.b16 %v450, %v448
          %v569 = vpack.c.b16 %v451, %v449
          %v570 = vpack.c.b16 %v454, %v452
          %v571 = vpack.c.b16 %v455, %v453
          %v572 = vpack.c.b16 %v458, %v456
          %v573 = vpack.c.b16 %v459, %v457
          %v574 = vpack.c.b16 %v462, %v460
          %v575 = vpack.c.b16 %v463, %v461
          %v576 = vpack.c.b16 %v466, %v464
          %v577 = vpack.c.b16 %v467, %v465
          %v578 = vpack.c.b16 %v470, %v468
          %v579 = vpack.c.b16 %v471, %v469
          %v580 = vpack.c.b16 %v474, %v472
          %v581 = vpack.c.b16 %v475, %v473
          %v582 = vpack.c.b16 %v478, %v476
          %v583 = vpack.c.b16 %v479, %v477
          %v584 = vpack.c.b16 %v482, %v480
          %v585 = vpack.c.b16 %v483, %v481
          %v586 = vpack.c.b16 %v486, %v484
          %v587 = vpack.c.b16 %v487, %v485
          %v588 = vpack.c.b16 %v490, %v488
          %v589 = vpack.c.b16 %v491, %v489
          %v590 = vpack.c.b16 %v494, %v492
          %v591 = vpack.c.b16 %v495, %v493
          %v592 = vpack.c.b16 %v498, %v496
          %v593 = vpack.c.b16 %v499, %v497
          %v594 = vpack.c.b16 %v502, %v500
          %v595 = vpack.c.b16 %v503, %v501
          %v596 = vpack.c.b16 %v506, %v504
          %v597 = vpack.c.b16 %v507, %v505
          %v598 = vpack.c.b16 %v510, %v508
          %v599 = vpack.c.b16 %v511, %v509
          %v600 = vpack.c.b16 %v514, %v512
          %v601 = vpack.c.b16 %v515, %v513
          %v602 = vpack.c.b16 %v518, %v516
          %v603 = vpack.c.b16 %v519, %v517
          %v604 = vpack.c.b16 %v522, %v520
          %v605 = vpack.c.b16 %v523, %v521
          %v606 = vpack.c.b16 %v526, %v524
          %v607 = vpack.c.b16 %v527, %v525
          %v608 = vpack.c.b16 %v530, %v528
          %v609 = vpack.c.b16 %v531, %v529
          %v610 = vpack.c.b16 %v534, %v532
          %v611 = vpack.c.b16 %v535, %v533
          %v612 = vpack.c.b16 %v538, %v536
          %v613 = vpack.c.b16 %v539, %v537
          %v614 = vpack.c.b16 %v542, %v540
          %v615 = vpack.c.b16 %v543, %v541
          %v616 = vpack.c.b16 %v546, %v544
          %v617 = vpack.c.b16 %v547, %v545
          %v618 = vpack.c.b16 %v550, %v548
          %v619 = vpack.c.b16 %v551, %v549
          %v620 = vpack.c.b16 %v554, %v552
          %v621 = vpack.c.b16 %v555, %v553
          %v622 = vpack.c.b16 %v558, %v556
          %v623 = vpack.c.b16 %v559, %v557
          %688 = vmatprep.subr.bf16.mxu0 %v561
          %689 = vmatpush1.bf16.msra.mxu0 %v560
          %690 = vmatprep.subr.bf16.mxu0 %v563
          %691 = vmatpush1.bf16.msra.mxu0 %v562
          %692 = vmatprep.subr.bf16.mxu0 %v565
          %693 = vmatpush1.bf16.msra.mxu0 %v564
          %694 = vmatprep.subr.bf16.mxu0 %v567
          %695 = vmatpush1.bf16.msra.mxu0 %v566
          %696 = vmatprep.subr.bf16.mxu0 %v569
          %697 = vmatpush1.bf16.msra.mxu0 %v568
          %698 = vmatprep.subr.bf16.mxu0 %v571
          %699 = vmatpush1.bf16.msra.mxu0 %v570
          %700 = vmatprep.subr.bf16.mxu0 %v573
          %701 = vmatpush1.bf16.msra.mxu0 %v572
          %702 = vmatprep.subr.bf16.mxu0 %v575
          %703 = vmatpush1.bf16.msra.mxu0 %v574
          %704 = vmatprep.subr.bf16.mxu0 %v577
          %705 = vmatpush1.bf16.msra.mxu0 %v576
          %706 = vmatprep.subr.bf16.mxu0 %v579
          %707 = vmatpush1.bf16.msra.mxu0 %v578
          %708 = vmatprep.subr.bf16.mxu0 %v581
          %709 = vmatpush1.bf16.msra.mxu0 %v580
          %710 = vmatprep.subr.bf16.mxu0 %v583
          %711 = vmatpush1.bf16.msra.mxu0 %v582
          %712 = vmatprep.subr.bf16.mxu0 %v585
          %713 = vmatpush1.bf16.msra.mxu0 %v584
          %714 = vmatprep.subr.bf16.mxu0 %v587
          %715 = vmatpush1.bf16.msra.mxu0 %v586
          %716 = vmatprep.subr.bf16.mxu0 %v589
          %717 = vmatpush1.bf16.msra.mxu0 %v588
          %718 = vmatprep.subr.bf16.mxu0 %v591
          %719 = vmatpush1.bf16.msra.mxu0 %v590
          %720 = vmatprep.mubr.bf16.mxu0 %v361
          %721 = vmatmul.mubr.bf16.gmra.mrb[0].mxu0 %v360
          %v722 = vpop.f32.mrb[0].mxu0
          %v723 = vadd.f32 0.0, %v722
          %v724 = vpop.f32.mrb[0].mxu0
          %v725 = vadd.f32 0.0, %v724
          %v726 = vpop.f32.mrb[0].mxu0
          %v727 = vadd.f32 0.0, %v726
          %v728 = vpop.f32.mrb[0].mxu0
          %v729 = vadd.f32 0.0, %v728
          %730 = vdwg.mxu0
          %731 = vmatprep.subr.bf16.mxu0 %v593
          %732 = vmatpush1.bf16.msra.mxu0 %v592
          %733 = vmatprep.subr.bf16.mxu0 %v595
          %734 = vmatpush1.bf16.msra.mxu0 %v594
          %735 = vmatprep.subr.bf16.mxu0 %v597
          %736 = vmatpush1.bf16.msra.mxu0 %v596
          %737 = vmatprep.subr.bf16.mxu0 %v599
          %738 = vmatpush1.bf16.msra.mxu0 %v598
          %739 = vmatprep.subr.bf16.mxu0 %v601
          %740 = vmatpush1.bf16.msra.mxu0 %v600
          %741 = vmatprep.subr.bf16.mxu0 %v603
          %742 = vmatpush1.bf16.msra.mxu0 %v602
          %743 = vmatprep.subr.bf16.mxu0 %v605
          %744 = vmatpush1.bf16.msra.mxu0 %v604
          %745 = vmatprep.subr.bf16.mxu0 %v607
          %746 = vmatpush1.bf16.msra.mxu0 %v606
          %747 = vmatprep.subr.bf16.mxu0 %v609
          %748 = vmatpush1.bf16.msra.mxu0 %v608
          %749 = vmatprep.subr.bf16.mxu0 %v611
          %750 = vmatpush1.bf16.msra.mxu0 %v610
          %751 = vmatprep.subr.bf16.mxu0 %v613
          %752 = vmatpush1.bf16.msra.mxu0 %v612
          %753 = vmatprep.subr.bf16.mxu0 %v615
          %754 = vmatpush1.bf16.msra.mxu0 %v614
          %755 = vmatprep.subr.bf16.mxu0 %v617
          %756 = vmatpush1.bf16.msra.mxu0 %v616
          %757 = vmatprep.subr.bf16.mxu0 %v619
          %758 = vmatpush1.bf16.msra.mxu0 %v618
          %759 = vmatprep.subr.bf16.mxu0 %v621
          %760 = vmatpush1.bf16.msra.mxu0 %v620
          %761 = vmatprep.subr.bf16.mxu0 %v623
          %762 = vmatpush1.bf16.msra.mxu0 %v622
          %763 = vmatprep.mubr.bf16.mxu0 %v363
          %764 = vmatmul.mubr.bf16.gmra.mrb[0].mxu0 %v362
          %v765 = vpop.f32.mrb[0].mxu0
          %v766 = vadd.f32 %v723, %v765
          %v767 = vpop.f32.mrb[0].mxu0
          %v768 = vadd.f32 %v725, %v767
          %v769 = vpop.f32.mrb[0].mxu0
          %v770 = vadd.f32 %v727, %v769
          %v771 = vpop.f32.mrb[0].mxu0
          %v772 = vadd.f32 %v729, %v771
          %773 = vdwg.mxu0
          %v774 = vadd.f32 %v276, %v766
          %v775 = vadd.f32 %v277, %v768
          %v776 = vadd.f32 %v278, %v770
          %v777 = vadd.f32 %v279, %v772
          %778 = vst [vmem:[#allocation2] sm:$0xff] %v774
          %779 = vst [vmem:[#allocation2 + $0x8] sm:$0xff] %v775
          %780 = vst [vmem:[#allocation2 + $0x10] sm:$0xff] %v776
          %781 = vst [vmem:[#allocation2 + $0x18] sm:$0xff] %v777
        $region40: #{_forward.1} parent=27 // pred_fallthru
          _
        // Predicated region
        $region41: #{_forward.1} parent=27 // pred_check
          %p782 = pneg %p263
        $region42: #{_forward.1} parent=27 // pred_check_branch
          %784 = sbr.rel (%p782) target = $region44
        $region43: #{_forward.1} parent=27 // pred_region
          %v785 = vld [vmem:[#allocation2] sm:$0xff]
          %v786 = vld [vmem:[#allocation2 + $0x8] sm:$0xff]
          %v787 = vld [vmem:[#allocation2 + $0x10] sm:$0xff]
          %v788 = vld [vmem:[#allocation2 + $0x18] sm:$0xff]
          %789 = vst [vmem:[%s240] sm:$0xff] %v785
          %790 = vst [vmem:[%s240 + $0x8] sm:$0xff] %v786
          %791 = vst [vmem:[%s240 + $0x10] sm:$0xff] %v787
          %792 = vst [vmem:[%s240 + $0x18] sm:$0xff] %v788
        $region44: #{_forward.1} parent=27 // pred_fallthru
          _
        %s793 = sand.u32 %s121, 1
        %s794 = sand.u32 %s121, 1
        %s795 = smul.addr %s794, 32
        %s796 = scalar_lea.vmem [#allocation8], %s795
        // Predicated region
        $region45: #{_forward.1} parent=27 // pred_check
          %p797 = pneg %p131
        $region46: #{_forward.1} parent=27 // pred_check_branch
          %799 = sbr.rel (%p797) target = $region48
        $region47: #{_forward.1} parent=27 // pred_region
          %s800 = smul.u32 2, %s33
          %s801 = smul.u32 2, %s34
          %s802 = smul.addr %s800, 4
          %s803 = sadd.s32 %s801, %s802
          %s804 = smul.addr %s803, 8
          %s805 = scalar_lea.vmem %s4, %s804
          // Predicated region
          $region49: #{_forward.1} parent=47 // pred_check
            _
          $region50: #{_forward.1} parent=47 // pred_check_branch
            %807 = sbr.rel (0) target = $region52
          $region51: #{_forward.1} parent=47 // pred_region
            // Predicated region
            $region53: #{_forward.1} parent=51 // pred_check
              _
            $region54: #{_forward.1} parent=51 // pred_check_branch
              %809 = sbr.rel (0) target = $region56
            $region55: #{_forward.1} parent=51 // pred_region
              loop: start=0, step=1, limit=1
              $region57: #{_forward.1} parent=55 // loop_pre_header
                _
              $region58: #{_forward.1} parent=55 // loop_header
                %s811 = sphi 0, %s815
                %p812 = scmp.ge.s32.totalorder %s811, 1
                %s816 = sphi %s796, %s796
                %s817 = sphi %s805, %s805
              $region59: #{_forward.1} parent=55 // loop_header_branch
                %814 = sbr.rel (%p812) target = $region63
              $region60: #{_forward.1} parent=55 // loop_body
                %v818 = vld [vmem:[%s816] sm:$0xff]
                %819 = vst [vmem:[%s817] sm:$0xff] %v818
                %v820 = vld [vmem:[%s816 + $0x8] sm:$0xff]
                %821 = vst [vmem:[%s817 + $0x8] sm:$0xff] %v820
                %v822 = vld [vmem:[%s816 + $0x10] sm:$0xff]
                %823 = vst [vmem:[%s817 + $0x20] sm:$0xff] %v822
                %v824 = vld [vmem:[%s816 + $0x18] sm:$0xff]
                %825 = vst [vmem:[%s817 + $0x28] sm:$0xff] %v824
              $region61: #{_forward.1} parent=55 // loop_footer
                %s815 = sadd.s32 1, %s811
              $region62: #{_forward.1} parent=55 // loop_footer_branch
                %810 = sbr.rel target = $region58
              $region63: #{_forward.1} parent=55 // loop_exit
                _
            $region56: #{_forward.1} parent=51 // pred_fallthru
              _
            // Predicated region
            $region64: #{_forward.1} parent=51 // pred_check
              _
            $region65: #{_forward.1} parent=51 // pred_check_branch
              %827 = sbr.rel target = $region67
            $region66: #{_forward.1} parent=51 // pred_region
              _
            $region67: #{_forward.1} parent=51 // pred_fallthru
              _
          $region52: #{_forward.1} parent=47 // pred_fallthru
            _
          %828 = vnop
        $region48: #{_forward.1} parent=27 // pred_fallthru
          _
      $region28: #{_forward.1} parent=5 // pred_fallthru
        _
      %p829 = scmp.le.s32.totalorder 2, %s23
      // Predicated region
      $region68: #{_forward.1} parent=5 // pred_check
        %p830 = pneg %p829
      $region69: #{_forward.1} parent=5 // pred_check_branch
        %832 = sbr.rel (%p830) target = $region71
      $region70: #{_forward.1} parent=5 // pred_region
        %s833 = ssub.s32 %s23, 2
        // Predicated region
        $region72: #{_forward.1} parent=70 // pred_check
          %p834 = pneg %p137
        $region73: #{_forward.1} parent=70 // pred_check_branch
          %836 = sbr.rel (%p834) target = $region75
        $region74: #{_forward.1} parent=70 // pred_region
          %s837 = sand.u32 %s122, 1
          %s838 = sand.u32 %s122, 1
          %s839 = smul.addr %s838, 32
          %s840 = scalar_lea.vmem [#allocation8], %s839
        $region75: #{_forward.1} parent=70 // pred_fallthru
          _
      $region71: #{_forward.1} parent=5 // pred_fallthru
        _
    $region6: #{_forward.1} parent=1 // loop_footer
      %s27 = sadd.s32 1, %s23
    $region7: #{_forward.1} parent=1 // loop_footer_branch
      %22 = sbr.rel target = $region3
    $region8: #{_forward.1} parent=1 // loop_exit
      _
    %841 = vsyncpa [#allocation7], 1
    %s842 = scalar_lea.sflag [#allocation7], 1
    %843 = vsyncpa %s842, 1

</llo_original>
